<compile_context>
chip_gen: v7x
topology: tpu7x:2x2x1
jax: 0.10.0
libtpu: 0.0.40
codegen_flags: <defaults>
</compile_context>

<pallas_src>
import jax
import jax.numpy as jnp
from jax import lax
from jax.experimental import pallas as pl
from jax.experimental.pallas import tpu as pltpu

BN_EPS = 1e-3
TM_CAP = 512   # max rows per output tile (full-K, full-N blocks)


def _round_up(x, m):
    return (x + m - 1) // m * m


def _cdiv(a, b):
    return -(-a // b)


def _tile_m(M):
    """M-tile size: multiple of 16 (bf16 sublane pack), capped, and split so the
    single 'parallel' grid axis has >= 2 steps when possible (v7x megacore)."""
    tm = min(_round_up(M, 16), TM_CAP)
    if _cdiv(M, tm) < 2 and M > 16:
        tm = _round_up(_cdiv(M, 2), 16)
    return tm


# ----------------------------------------------------------------------------
# Fused conv-as-matmul (BN folded into bf16 weights) + bias + ReLU kernel
# ----------------------------------------------------------------------------
def _matmul_bias_relu_kernel(x_ref, w_ref, b_ref, o_ref):
    y = jnp.dot(x_ref[...], w_ref[...], preferred_element_type=jnp.float32)
    o_ref[...] = jnp.maximum(y + b_ref[...], 0.0).astype(o_ref.dtype)


def matmul_bias_relu(x, w, bias, out_dtype=jnp.float32):
    """relu(x @ w + bias); x:(M,K) bf16, w:(K,N) bf16 BN-folded, bias:(N,) f32."""
    M, K = x.shape
    _, N = w.shape
    tm = _tile_m(M)
    return pl.pallas_call(
        _matmul_bias_relu_kernel,
        out_shape=jax.ShapeDtypeStruct((M, N), out_dtype),
        grid_spec=pltpu.PrefetchScalarGridSpec(
            num_scalar_prefetch=0,
            grid=(pl.cdiv(M, tm),),
            in_specs=[
                pl.BlockSpec((tm, K), lambda i: (i, 0)),   # full-K bf16 row tile
                pl.BlockSpec((K, N), lambda i: (0, 0)),    # resident bf16 weight
                pl.BlockSpec((1, N), lambda i: (0, 0)),    # f32 bias row
            ],
            out_specs=pl.BlockSpec((tm, N), lambda i: (i, 0)),  # lane-dense full-N
        ),
        compiler_params=pltpu.CompilerParams(
            dimension_semantics=("parallel",)),
    )(x, w, bias.reshape(1, N))


# ----------------------------------------------------------------------------
# Fused pair of 1x1 convs on the same input: one kernel, one x read, two outputs
# ----------------------------------------------------------------------------
def _fused_pair_kernel(x_ref, wa_ref, wb_ref, ba_ref, bb_ref, oa_ref, ob_ref):
    x = x_ref[...]
    ya = jnp.dot(x, wa_ref[...], preferred_element_type=jnp.float32)
    yb = jnp.dot(x, wb_ref[...], preferred_element_type=jnp.float32)
    oa_ref[...] = jnp.maximum(ya + ba_ref[...], 0.0).astype(oa_ref.dtype)
    ob_ref[...] = jnp.maximum(yb + bb_ref[...], 0.0).astype(ob_ref.dtype)


def fused_1x1_pair(x, params_a, params_b):
    """Two 1x1 BasicConv2d on the same NHWC input; outputs bf16 (feed next convs)."""
    wa, ba, _ = fold_bn(params_a)
    wb, bb, _ = fold_bn(params_b)
    N, H, W, Cin = x.shape
    M = N * H * W
    na, nb = wa.shape[1], wb.shape[1]
    x2d = x.reshape(M, Cin).astype(jnp.bfloat16)
    tm = _tile_m(M)
    ya, yb = pl.pallas_call(
        _fused_pair_kernel,
        out_shape=(jax.ShapeDtypeStruct((M, na), jnp.bfloat16),
                   jax.ShapeDtypeStruct((M, nb), jnp.bfloat16)),
        grid_spec=pltpu.PrefetchScalarGridSpec(
            num_scalar_prefetch=0,
            grid=(pl.cdiv(M, tm),),
            in_specs=[
                pl.BlockSpec((tm, Cin), lambda i: (i, 0)),
                pl.BlockSpec((Cin, na), lambda i: (0, 0)),
                pl.BlockSpec((Cin, nb), lambda i: (0, 0)),
                pl.BlockSpec((1, na), lambda i: (0, 0)),
                pl.BlockSpec((1, nb), lambda i: (0, 0)),
            ],
            out_specs=[pl.BlockSpec((tm, na), lambda i: (i, 0)),
                       pl.BlockSpec((tm, nb), lambda i: (i, 0))],
        ),
        compiler_params=pltpu.CompilerParams(
            dimension_semantics=("parallel",)),
    )(x2d, wa.astype(jnp.bfloat16), wb.astype(jnp.bfloat16),
      ba.reshape(1, na), bb.reshape(1, nb))
    return ya.reshape(N, H, W, na), yb.reshape(N, H, W, nb)


# ----------------------------------------------------------------------------
# 3x3 / stride-2 max-pool kernel: window axis leading (untiled), M tiled & parallel
# ----------------------------------------------------------------------------
def _maxpool_kernel(p_ref, o_ref):
    acc = p_ref[0]
    for t in range(1, p_ref.shape[0]):
        acc = jnp.maximum(acc, p_ref[t])
    o_ref[...] = acc


def maxpool_rows(patches):
    """patches: (KK, M, C) -> (M, C) max over the leading window axis."""
    KK, M, C = patches.shape
    tm = _tile_m(M)
    return pl.pallas_call(
        _maxpool_kernel,
        out_shape=jax.ShapeDtypeStruct((M, C), patches.dtype),
        grid_spec=pltpu.PrefetchScalarGridSpec(
            num_scalar_prefetch=0,
            grid=(pl.cdiv(M, tm),),
            in_specs=[pl.BlockSpec((KK, tm, C), lambda i: (0, i, 0))],
            out_specs=pl.BlockSpec((tm, C), lambda i: (i, 0)),
        ),
        compiler_params=pltpu.CompilerParams(
            dimension_semantics=("parallel",)),
    )(patches)


# ----------------------------------------------------------------------------
# Host-side glue: tap extraction, BN folding, layer wrappers
# ----------------------------------------------------------------------------
def _extract_patches(x, kh, kw, stride, padding):
    """x: (N,H,W,C) NHWC -> list of kh*kw taps, each (N,OH,OW,C), plus OH, OW."""
    ph, pw = padding
    if ph or pw:
        x = jnp.pad(x, ((0, 0), (ph, ph), (pw, pw), (0, 0)))
    _, H, W, _ = x.shape
    OH = (H - kh) // stride + 1
    OW = (W - kw) // stride + 1
    taps = [x[:, i:i + stride * (OH - 1) + 1:stride,
              j:j + stride * (OW - 1) + 1:stride, :]
            for i in range(kh) for j in range(kw)]
    return taps, OH, OW


def fold_bn(params):
    """Fold inference BN into (K,Cout) f32 weight + (Cout,) f32 bias (cast later)."""
    w_oihw, gamma, beta, mean, var = params
    Cout, Cin, KH, KW = w_oihw.shape
    scale = gamma / jnp.sqrt(var + BN_EPS)
    w2d = jnp.transpose(w_oihw, (2, 3, 1, 0)).reshape(KH * KW * Cin, Cout)
    w2d = w2d * scale[None, :]                 # scale folded into weights
    bias = beta - mean * scale
    return w2d, bias, (KH, KW)


def conv_bn_relu(x, params, stride=1, padding=(0, 0), out_dtype=jnp.bfloat16):
    """BasicConv2d: conv(bias=False) + BN(eps=1e-3, inference) + ReLU (NHWC)."""
    w2d, bias, (KH, KW) = fold_bn(params)
    N = x.shape[0]
    Cin = x.shape[-1]
    if KH == 1 and KW == 1 and stride == 1 and padding == (0, 0):
        OH, OW = x.shape[1], x.shape[2]
        x2d = x.reshape(N * OH * OW, Cin)      # 1x1 conv: no im2col needed
    else:
        # TODO(synk): replace host-side im2col with in-kernel tap accumulation
        # from the raw padded NHWC activation (7-9x HBM saving at real sizes).
        taps, OH, OW = _extract_patches(x, KH, KW, stride, padding)
        x2d = jnp.concatenate(taps, axis=-1).reshape(N * OH * OW, KH * KW * Cin)
    y = matmul_bias_relu(x2d.astype(jnp.bfloat16), w2d.astype(jnp.bfloat16),
                         bias, out_dtype=out_dtype)
    return y.reshape(N, OH, OW, w2d.shape[1])


def max_pool_3x3_s2(x):
    taps, OH, OW = _extract_patches(x, 3, 3, 2, (0, 0))
    N = x.shape[0]
    C = x.shape[-1]
    p = jnp.stack(taps, axis=0).reshape(9, N * OH * OW, C)   # window axis leading
    return maxpool_rows(p).reshape(N, OH, OW, C)


def inception_d_forward(x_nchw, params):
    x = jnp.transpose(x_nchw, (0, 2, 3, 1))  # NCHW -> NHWC, f32
    # Fused 1x1 stem convs (branch3x3_1 + branch7x7x3_1): one kernel, two bf16 outputs.
    b3, b7 = fused_1x1_pair(x, params["branch3x3_1"], params["branch7x7x3_1"])
    b3 = conv_bn_relu(b3, params["branch3x3_2"], stride=2, padding=(0, 0),
                      out_dtype=jnp.float32)
    b7 = conv_bn_relu(b7, params["branch7x7x3_2"], stride=1, padding=(0, 3),
                      out_dtype=jnp.bfloat16)
    b7 = conv_bn_relu(b7, params["branch7x7x3_3"], stride=1, padding=(3, 0),
                      out_dtype=jnp.bfloat16)
    b7 = conv_bn_relu(b7, params["branch7x7x3_4"], stride=2, padding=(0, 0),
                      out_dtype=jnp.float32)
    bp = max_pool_3x3_s2(x)                                  # exact f32 pool branch
    out = jnp.concatenate([b3, b7, bp], axis=-1)             # channel concat
    return jnp.transpose(out, (0, 3, 1, 2))                  # NHWC -> NCHW


# ----------------------------------------------------------------------------
# Deterministic parameter init (synthetic; shapes from InceptionD.__init__)
# ----------------------------------------------------------------------------
def make_conv_bn_params(key, cin, cout, kh, kw):
    k1, k2, k3, k4, k5 = jax.random.split(key, 5)
    fan_in = cin * kh * kw
    w = jax.random.normal(k1, (cout, cin, kh, kw), jnp.float32) / jnp.sqrt(fan_in)
    gamma = 0.5 + jax.random.uniform(k2, (cout,), jnp.float32)
    beta = 0.1 * jax.random.normal(k3, (cout,), jnp.float32)
    mean = 0.1 * jax.random.normal(k4, (cout,), jnp.float32)
    var = 0.5 + jax.random.uniform(k5, (cout,), jnp.float32)
    return (w, gamma, beta, mean, var)


def make_inception_d_params(key, in_channels):
    ks = jax.random.split(key, 6)
    return {
        "branch3x3_1":   make_conv_bn_params(ks[0], in_channels, 192, 1, 1),
        "branch3x3_2":   make_conv_bn_params(ks[1], 192, 320, 3, 3),
        "branch7x7x3_1": make_conv_bn_params(ks[2], in_channels, 192, 1, 1),
        "branch7x7x3_2": make_conv_bn_params(ks[3], 192, 192, 1, 7),
        "branch7x7x3_3": make_conv_bn_params(ks[4], 192, 192, 7, 1),
        "branch7x7x3_4": make_conv_bn_params(ks[5], 192, 192, 3, 3),
    }


# ----------------------------------------------------------------------------
# Pure-JAX reference with matched bf16 operand precision (f32 accumulation),
# so the check isolates kernel correctness from the (intended) bf16 quantization.
# ----------------------------------------------------------------------------
def _ref_conv_bn_relu(x, params, stride, padding):
    w_oihw, gamma, beta, mean, var = params
    scale = gamma / jnp.sqrt(var + BN_EPS)
    w_hwio = jnp.transpose(w_oihw, (2, 3, 1, 0)) * scale      # BN folded, f32
    y = lax.conv_general_dilated(
        x.astype(jnp.bfloat16), w_hwio.astype(jnp.bfloat16),
        window_strides=(stride, stride),
        padding=((padding[0], padding[0]), (padding[1], padding[1])),
        dimension_numbers=("NHWC", "HWIO", "NHWC"),
        preferred_element_type=jnp.float32)
    return jnp.maximum(y + (beta - mean * scale), 0.0)


def _ref_forward(x_nchw, params):
    x = jnp.transpose(x_nchw, (0, 2, 3, 1))
    b3 = _ref_conv_bn_relu(x, params["branch3x3_1"], 1, (0, 0))
    b3 = _ref_conv_bn_relu(b3, params["branch3x3_2"], 2, (0, 0))
    b7 = _ref_conv_bn_relu(x, params["branch7x7x3_1"], 1, (0, 0))
    b7 = _ref_conv_bn_relu(b7, params["branch7x7x3_2"], 1, (0, 3))
    b7 = _ref_conv_bn_relu(b7, params["branch7x7x3_3"], 1, (3, 0))
    b7 = _ref_conv_bn_relu(b7, params["branch7x7x3_4"], 2, (0, 0))
    bp = lax.reduce_window(x, -jnp.inf, lax.max,
                           (1, 3, 3, 1), (1, 2, 2, 1), "VALID")
    out = jnp.concatenate([b3, b7, bp], axis=-1)
    return jnp.transpose(out, (0, 3, 1, 2))


if __name__ == "__main__":
    N, C_IN, H, W = 2, 32, 9, 9   # small; output spatial 4x4, channels = 320+192+32
    key = jax.random.PRNGKey(0)
    kx, kp = jax.random.split(key)
    x = jax.random.normal(kx, (N, C_IN, H, W), jnp.float32)
    params = make_inception_d_params(kp, C_IN)

    out = inception_d_forward(x, params)
    out = jax.block_until_ready(out)

    ref = jax.block_until_ready(_ref_forward(x, params))
    assert out.shape == (N, 320 + 192 + C_IN, 4, 4), out.shape
    assert jnp.allclose(out, ref, atol=2e-2, rtol=2e-2), \
        float(jnp.max(jnp.abs(out - ref)))

    print("KERNEL_OK")
</pallas_src>

<mosaic_0001>
module attributes {stable_mosaic.version = 11 : i64} {
  func.func @_fused_pair_kernel(%arg0: i32, %arg1: memref<96x32xbf16, #tpu.memory_space<vmem>>, %arg2: memref<32x192xbf16, #tpu.memory_space<vmem>>, %arg3: memref<32x192xbf16, #tpu.memory_space<vmem>>, %arg4: memref<1x192xf32, #tpu.memory_space<vmem>>, %arg5: memref<1x192xf32, #tpu.memory_space<vmem>>, %arg6: memref<96x192xbf16, #tpu.memory_space<vmem>>, %arg7: memref<96x192xbf16, #tpu.memory_space<vmem>>) attributes {dimension_semantics = [#tpu.dimension_semantics<parallel>], iteration_bounds = array<i64: 2>, scalar_prefetch = 0 : i64, scratch_operands = 0 : i64, tpu.core_type = #tpu.core_type<tc>, window_params = [{transform_indices = @transform_0, window_bounds = array<i64: 96, 32>}, {pipeline_mode = #tpu.pipeline_mode<synchronous>, transform_indices = @transform_1, window_bounds = array<i64: 32, 192>}, {pipeline_mode = #tpu.pipeline_mode<synchronous>, transform_indices = @transform_2, window_bounds = array<i64: 32, 192>}, {pipeline_mode = #tpu.pipeline_mode<synchronous>, transform_indices = @transform_3, window_bounds = array<i64: 1, 192>}, {pipeline_mode = #tpu.pipeline_mode<synchronous>, transform_indices = @transform_4, window_bounds = array<i64: 1, 192>}, {transform_indices = @transform_5, window_bounds = array<i64: 96, 192>}, {transform_indices = @transform_6, window_bounds = array<i64: 96, 192>}]} {
    %c0 = arith.constant 0 : index
    %c0_0 = arith.constant 0 : index
    %0 = vector.load %arg1[%c0, %c0_0] : memref<96x32xbf16, #tpu.memory_space<vmem>>, vector<96x32xbf16>
    %c0_1 = arith.constant 0 : index
    %c0_2 = arith.constant 0 : index
    %1 = vector.load %arg2[%c0_1, %c0_2] : memref<32x192xbf16, #tpu.memory_space<vmem>>, vector<32x192xbf16>
    %cst = arith.constant dense<0.000000e+00> : vector<96x192xf32>
    %2 = tpu.matmul %0, %1, %cst {dimension_numbers = #tpu.dot_dimension_numbers<[1], [0], [0], [1], [0, 0, 1, 1], [], []>} : vector<96x32xbf16>, vector<32x192xbf16>, vector<96x192xf32> -> vector<96x192xf32>
    %c0_3 = arith.constant 0 : index
    %c0_4 = arith.constant 0 : index
    %3 = vector.load %arg3[%c0_3, %c0_4] : memref<32x192xbf16, #tpu.memory_space<vmem>>, vector<32x192xbf16>
    %cst_5 = arith.constant dense<0.000000e+00> : vector<96x192xf32>
    %4 = tpu.matmul %0, %3, %cst_5 {dimension_numbers = #tpu.dot_dimension_numbers<[1], [0], [0], [1], [0, 0, 1, 1], [], []>} : vector<96x32xbf16>, vector<32x192xbf16>, vector<96x192xf32> -> vector<96x192xf32>
    %c0_6 = arith.constant 0 : index
    %c0_7 = arith.constant 0 : index
    %5 = vector.load %arg4[%c0_6, %c0_7] : memref<1x192xf32, #tpu.memory_space<vmem>>, vector<1x192xf32>
    %6 = vector.broadcast %5 : vector<1x192xf32> to vector<96x192xf32>
    %7 = arith.addf %2, %6 : vector<96x192xf32>
    %cst_8 = arith.constant 0.000000e+00 : f32
    %8 = vector.broadcast %cst_8 : f32 to vector<96x192xf32>
    %9 = arith.maximumf %7, %8 : vector<96x192xf32>
    %10 = arith.truncf %9 : vector<96x192xf32> to vector<96x192xbf16>
    %c0_9 = arith.constant 0 : index
    %c0_10 = arith.constant 0 : index
    %11 = vector.load %arg6[%c0_9, %c0_10] : memref<96x192xbf16, #tpu.memory_space<vmem>>, vector<96x192xbf16>
    tpu.vector_store %arg6[%c0_9, %c0_10], %10 {strides = array<i32>} : memref<96x192xbf16, #tpu.memory_space<vmem>>, vector<96x192xbf16>,
    %c0_11 = arith.constant 0 : index
    %c0_12 = arith.constant 0 : index
    %12 = vector.load %arg5[%c0_11, %c0_12] : memref<1x192xf32, #tpu.memory_space<vmem>>, vector<1x192xf32>
    %13 = vector.broadcast %12 : vector<1x192xf32> to vector<96x192xf32>
    %14 = arith.addf %4, %13 : vector<96x192xf32>
    %cst_13 = arith.constant 0.000000e+00 : f32
    %15 = vector.broadcast %cst_13 : f32 to vector<96x192xf32>
    %16 = arith.maximumf %14, %15 : vector<96x192xf32>
    %17 = arith.truncf %16 : vector<96x192xf32> to vector<96x192xbf16>
    %c0_14 = arith.constant 0 : index
    %c0_15 = arith.constant 0 : index
    %18 = vector.load %arg7[%c0_14, %c0_15] : memref<96x192xbf16, #tpu.memory_space<vmem>>, vector<96x192xbf16>
    tpu.vector_store %arg7[%c0_14, %c0_15], %17 {strides = array<i32>} : memref<96x192xbf16, #tpu.memory_space<vmem>>, vector<96x192xbf16>,
    return
  }
  func.func @transform_0(%arg0: i32) -> (i32, i32) {
    %c0_i32 = arith.constant 0 : i32
    %c0_i32_0 = arith.constant 0 : i32
    return %arg0, %c0_i32 : i32, i32
  }
  func.func @transform_1(%arg0: i32) -> (i32, i32) {
    %c0_i32 = arith.constant 0 : i32
    %c0_i32_0 = arith.constant 0 : i32
    %c0_i32_1 = arith.constant 0 : i32
    return %c0_i32, %c0_i32_0 : i32, i32
  }
  func.func @transform_2(%arg0: i32) -> (i32, i32) {
    %c0_i32 = arith.constant 0 : i32
    %c0_i32_0 = arith.constant 0 : i32
    %c0_i32_1 = arith.constant 0 : i32
    return %c0_i32, %c0_i32_0 : i32, i32
  }
  func.func @transform_3(%arg0: i32) -> (i32, i32) {
    %c0_i32 = arith.constant 0 : i32
    %c0_i32_0 = arith.constant 0 : i32
    %c0_i32_1 = arith.constant 0 : i32
    return %c0_i32, %c0_i32_0 : i32, i32
  }
  func.func @transform_4(%arg0: i32) -> (i32, i32) {
    %c0_i32 = arith.constant 0 : i32
    %c0_i32_0 = arith.constant 0 : i32
    %c0_i32_1 = arith.constant 0 : i32
    return %c0_i32, %c0_i32_0 : i32, i32
  }
  func.func @transform_5(%arg0: i32) -> (i32, i32) {
    %c0_i32 = arith.constant 0 : i32
    %c0_i32_0 = arith.constant 0 : i32
    return %arg0, %c0_i32 : i32, i32
  }
  func.func @transform_6(%arg0: i32) -> (i32, i32) {
    %c0_i32 = arith.constant 0 : i32
    %c0_i32_0 = arith.constant 0 : i32
    return %arg0, %c0_i32 : i32, i32
  }
}

</mosaic_0001>

<llo_original>
// kernel: tpu_custom_call.1
$region0: #{tpu_custom_call.1}
  #allocation0 [shape = 'u32[]', space=smem, size = 0x4, offset = 0x4, fixed_abs, tag = 'smem constant byte address 0x4 - core index']
  #allocation1 [shape = 'u32[144,128]{1,0:T(1,128)}', space=vmem, size = 0x12000, scoped, tag = 'internal scratch']
  %s0 = inlined_call_operand.vmem [shape: bf16[162,32], index: 0, kind: input, shape index: {}]
  %s1 = inlined_call_operand.vmem [shape: bf16[32,192], index: 1, kind: input, shape index: {}]
  %s2 = inlined_call_operand.vmem [shape: bf16[32,192], index: 2, kind: input, shape index: {}]
  %s3 = inlined_call_operand.vmem [shape: f32[1,192], index: 3, kind: input, shape index: {}]
  %s4 = inlined_call_operand.vmem [shape: f32[1,192], index: 4, kind: input, shape index: {}]
  %s5 = inlined_call_operand.hbm [shape: bf16[162,192], index: 5, kind: output, shape index: {0}]
  %s6 = inlined_call_operand.hbm [shape: bf16[162,192], index: 6, kind: output, shape index: {1}]
  %7 = xla_tuple %s5, %s6
  %s8 = sld [smem:[#allocation0]]
  $region61: #{tpu_custom_call.1} parent=0
    _
  %s10 = ssub.s32 1, %s8
  %s11 = scalar_select 0, %s10, %s8
  $region1: #{tpu_custom_call.1} parent=0
    #allocation2 [shape = 'u8[98304]{0}', space=vmem, size = 0x18000, scoped, tag = 'output window, operand 0']
    #allocation3 [shape = 's32[2]{0}', space=sflag, size = 0x8, scoped, tag = 'scoped memory for tpu_custom_call.1']
    #allocation4 [shape = 'u8[98304]{0}', space=vmem, size = 0x18000, scoped, tag = 'output window, operand 1']
    #allocation5 [shape = 's32[2]{0}', space=sflag, size = 0x8, scoped, tag = 'scoped memory for tpu_custom_call.1']
    %12 = vsyncpa [#allocation3], 0
    %s13 = scalar_lea.sflag [#allocation3], 1
    %14 = vsyncpa %s13, 0
    %15 = vsyncpa [#allocation5], 0
    %s16 = scalar_lea.sflag [#allocation5], 1
    %17 = vsyncpa %s16, 0
    loop: start=0, step=1, limit=4
    $region2: #{tpu_custom_call.1} parent=1 // loop_pre_header
      _
    $region3: #{tpu_custom_call.1} parent=1 // loop_header
      %s19 = sphi 0, %s23
      %p20 = scmp.ge.s32.totalorder %s19, 4
      %s29 = sphi 0, %s31
      %s32 = sphi 0, %s29
      %s33 = sphi 0, %s32
      %s49 = sphi 0, %s33
      %s53 = sphi 0, %s53
      %s55 = sphi 0, %s53
      %s56 = sphi 0, %s55
      %s70 = sphi 0, %s56
      %s74 = sphi 0, %s74
      %s76 = sphi 0, %s74
      %s77 = sphi 0, %s76
      %s91 = sphi 0, %s77
      %s95 = sphi 0, %s95
      %s97 = sphi 0, %s95
      %s98 = sphi 0, %s97
      %s112 = sphi 0, %s98
      %s116 = sphi 0, %s116
      %s118 = sphi 0, %s116
      %s119 = sphi 0, %s118
      %s133 = sphi 0, %s119
      %s139 = sphi 0, %s141
      %s142 = sphi 0, %s139
      %s143 = sphi 0, %s142
      %s159 = sphi 0, %s143
      %s165 = sphi 0, %s167
      %s168 = sphi 0, %s165
      %s169 = sphi 0, %s168
      %s185 = sphi 0, %s169
    $region4: #{tpu_custom_call.1} parent=1 // loop_header_branch
      %22 = sbr.rel (%p20) target = $region8
    $region5: #{tpu_custom_call.1} parent=1 // loop_body
      %s24 = ssub.s32 %s19, 1
      %s25 = ssub.s32 %s19, 2
      %s26 = sadd.s32 %s19, 1
      %s27 = ssub.s32 %s19, %s26
      %p28 = scmp.eq.s32.totalorder %s27, 0
      %s30 = sadd.s32 %s29, 1
      %s31 = scalar_select %p28, %s29, %s30
      %p34 = pneg %p28
      %p35 = scmp.eq.s32.totalorder %s19, 1
      %p36 = por %p34, %p35
      %p37 = scmp.ne.s32.totalorder %s29, %s32
      %p38 = scmp.eq.s32.totalorder %s19, 0
      %p39 = por %p37, %p38
      %p40 = scmp.ne.s32.totalorder %s29, %s32
      %p41 = scmp.eq.s32.totalorder %s24, 1
      %p42 = por %p40, %p41
      %p43 = scmp.ne.s32.totalorder %s32, %s33
      %p44 = scmp.eq.s32.totalorder %s24, 0
      %p45 = por %p43, %p44
      %p46 = scmp.ne.s32.totalorder %s32, %s33
      %p47 = scmp.eq.s32.totalorder %s25, 1
      %p48 = por %p46, %p47
      %p50 = scmp.ne.s32.totalorder %s33, %s49
      %p51 = scmp.eq.s32.totalorder %s25, 0
      %p52 = por %p50, %p51
      %s54 = sadd.s32 %s53, 1
      %p57 = scmp.eq.s32.totalorder %s19, 1
      %p58 = scmp.ne.s32.totalorder %s53, %s55
      %p59 = scmp.eq.s32.totalorder %s19, 0
      %p60 = por %p58, %p59
      %p61 = scmp.ne.s32.totalorder %s53, %s55
      %p62 = scmp.eq.s32.totalorder %s24, 1
      %p63 = por %p61, %p62
      %p64 = scmp.ne.s32.totalorder %s55, %s56
      %p65 = scmp.eq.s32.totalorder %s24, 0
      %p66 = por %p64, %p65
      %p67 = scmp.ne.s32.totalorder %s55, %s56
      %p68 = scmp.eq.s32.totalorder %s25, 1
      %p69 = por %p67, %p68
      %p71 = scmp.ne.s32.totalorder %s56, %s70
      %p72 = scmp.eq.s32.totalorder %s25, 0
      %p73 = por %p71, %p72
      %s75 = sadd.s32 %s74, 1
      %p78 = scmp.eq.s32.totalorder %s19, 1
      %p79 = scmp.ne.s32.totalorder %s74, %s76
      %p80 = scmp.eq.s32.totalorder %s19, 0
      %p81 = por %p79, %p80
      %p82 = scmp.ne.s32.totalorder %s74, %s76
      %p83 = scmp.eq.s32.totalorder %s24, 1
      %p84 = por %p82, %p83
      %p85 = scmp.ne.s32.totalorder %s76, %s77
      %p86 = scmp.eq.s32.totalorder %s24, 0
      %p87 = por %p85, %p86
      %p88 = scmp.ne.s32.totalorder %s76, %s77
      %p89 = scmp.eq.s32.totalorder %s25, 1
      %p90 = por %p88, %p89
      %p92 = scmp.ne.s32.totalorder %s77, %s91
      %p93 = scmp.eq.s32.totalorder %s25, 0
      %p94 = por %p92, %p93
      %s96 = sadd.s32 %s95, 1
      %p99 = scmp.eq.s32.totalorder %s19, 1
      %p100 = scmp.ne.s32.totalorder %s95, %s97
      %p101 = scmp.eq.s32.totalorder %s19, 0
      %p102 = por %p100, %p101
      %p103 = scmp.ne.s32.totalorder %s95, %s97
      %p104 = scmp.eq.s32.totalorder %s24, 1
      %p105 = por %p103, %p104
      %p106 = scmp.ne.s32.totalorder %s97, %s98
      %p107 = scmp.eq.s32.totalorder %s24, 0
      %p108 = por %p106, %p107
      %p109 = scmp.ne.s32.totalorder %s97, %s98
      %p110 = scmp.eq.s32.totalorder %s25, 1
      %p111 = por %p109, %p110
      %p113 = scmp.ne.s32.totalorder %s98, %s112
      %p114 = scmp.eq.s32.totalorder %s25, 0
      %p115 = por %p113, %p114
      %s117 = sadd.s32 %s116, 1
      %p120 = scmp.eq.s32.totalorder %s19, 1
      %p121 = scmp.ne.s32.totalorder %s116, %s118
      %p122 = scmp.eq.s32.totalorder %s19, 0
      %p123 = por %p121, %p122
      %p124 = scmp.ne.s32.totalorder %s116, %s118
      %p125 = scmp.eq.s32.totalorder %s24, 1
      %p126 = por %p124, %p125
      %p127 = scmp.ne.s32.totalorder %s118, %s119
      %p128 = scmp.eq.s32.totalorder %s24, 0
      %p129 = por %p127, %p128
      %p130 = scmp.ne.s32.totalorder %s118, %s119
      %p131 = scmp.eq.s32.totalorder %s25, 1
      %p132 = por %p130, %p131
      %p134 = scmp.ne.s32.totalorder %s119, %s133
      %p135 = scmp.eq.s32.totalorder %s25, 0
      %p136 = por %p134, %p135
      %s137 = ssub.s32 %s19, %s26
      %p138 = scmp.eq.s32.totalorder %s137, 0
      %s140 = sadd.s32 %s139, 1
      %s141 = scalar_select %p138, %s139, %s140
      %p144 = pneg %p138
      %p145 = scmp.eq.s32.totalorder %s19, 1
      %p146 = por %p144, %p145
      %p147 = scmp.ne.s32.totalorder %s139, %s142
      %p148 = scmp.eq.s32.totalorder %s19, 0
      %p149 = por %p147, %p148
      %p150 = scmp.ne.s32.totalorder %s139, %s142
      %p151 = scmp.eq.s32.totalorder %s24, 1
      %p152 = por %p150, %p151
      %p153 = scmp.ne.s32.totalorder %s142, %s143
      %p154 = scmp.eq.s32.totalorder %s24, 0
      %p155 = por %p153, %p154
      %p156 = scmp.ne.s32.totalorder %s142, %s143
      %p157 = scmp.eq.s32.totalorder %s25, 1
      %p158 = por %p156, %p157
      %p160 = scmp.ne.s32.totalorder %s143, %s159
      %p161 = scmp.eq.s32.totalorder %s25, 0
      %p162 = por %p160, %p161
      %s163 = ssub.s32 %s19, %s26
      %p164 = scmp.eq.s32.totalorder %s163, 0
      %s166 = sadd.s32 %s165, 1
      %s167 = scalar_select %p164, %s165, %s166
      %p170 = pneg %p164
      %p171 = scmp.eq.s32.totalorder %s19, 1
      %p172 = por %p170, %p171
      %p173 = scmp.ne.s32.totalorder %s165, %s168
      %p174 = scmp.eq.s32.totalorder %s19, 0
      %p175 = por %p173, %p174
      %p176 = scmp.ne.s32.totalorder %s165, %s168
      %p177 = scmp.eq.s32.totalorder %s24, 1
      %p178 = por %p176, %p177
      %p179 = scmp.ne.s32.totalorder %s168, %s169
      %p180 = scmp.eq.s32.totalorder %s24, 0
      %p181 = por %p179, %p180
      %p182 = scmp.ne.s32.totalorder %s168, %s169
      %p183 = scmp.eq.s32.totalorder %s25, 1
      %p184 = por %p182, %p183
      %p186 = scmp.ne.s32.totalorder %s169, %s185
      %p187 = scmp.eq.s32.totalorder %s25, 0
      %p188 = por %p186, %p187
      %p189 = scmp.le.s32.totalorder 1, %s19
      %p190 = scmp.lt.s32.totalorder %s19, 3
      %p191 = pnand %p189, %p190
      %p192 = pneg %p191
      // Predicated region
      $region9: #{tpu_custom_call.1} parent=5 // pred_check
        _
      $region10: #{tpu_custom_call.1} parent=5 // pred_check_branch
        %194 = sbr.rel (%p191) target = $region12
      $region11: #{tpu_custom_call.1} parent=5 // pred_region
        %s195 = ssub.s32 %s19, 1
        // Predicated region
        $region13: #{tpu_custom_call.1} parent=11 // pred_check
          %p196 = pneg %p66
        $region14: #{tpu_custom_call.1} parent=11 // pred_check_branch
          %198 = sbr.rel (%p196) target = $region16
        $region15: #{tpu_custom_call.1} parent=11 // pred_region
          _
        $region16: #{tpu_custom_call.1} parent=11 // pred_fallthru
          _
        // Predicated region
        $region17: #{tpu_custom_call.1} parent=11 // pred_check
          %p199 = pneg %p87
        $region18: #{tpu_custom_call.1} parent=11 // pred_check_branch
          %201 = sbr.rel (%p199) target = $region20
        $region19: #{tpu_custom_call.1} parent=11 // pred_region
          _
        $region20: #{tpu_custom_call.1} parent=11 // pred_fallthru
          _
        // Predicated region
        $region21: #{tpu_custom_call.1} parent=11 // pred_check
          %p202 = pneg %p108
        $region22: #{tpu_custom_call.1} parent=11 // pred_check_branch
          %204 = sbr.rel (%p202) target = $region24
        $region23: #{tpu_custom_call.1} parent=11 // pred_region
          _
        $region24: #{tpu_custom_call.1} parent=11 // pred_fallthru
          _
        // Predicated region
        $region25: #{tpu_custom_call.1} parent=11 // pred_check
          %p205 = pneg %p129
        $region26: #{tpu_custom_call.1} parent=11 // pred_check_branch
          %207 = sbr.rel (%p205) target = $region28
        $region27: #{tpu_custom_call.1} parent=11 // pred_region
          _
        $region28: #{tpu_custom_call.1} parent=11 // pred_fallthru
          _
      $region12: #{tpu_custom_call.1} parent=5 // pred_fallthru
        _
      %p208 = scmp.lt.s32.totalorder %s19, 2
      // Predicated region
      $region29: #{tpu_custom_call.1} parent=5 // pred_check
        %p209 = pneg %p208
      $region30: #{tpu_custom_call.1} parent=5 // pred_check_branch
        %211 = sbr.rel (%p209) target = $region32
      $region31: #{tpu_custom_call.1} parent=5 // pred_region
        // Predicated region
        $region33: #{tpu_custom_call.1} parent=31 // pred_check
          %p212 = pneg %p39
        $region34: #{tpu_custom_call.1} parent=31 // pred_check_branch
          %214 = sbr.rel (%p212) target = $region36
        $region35: #{tpu_custom_call.1} parent=31 // pred_region
          %s215 = smul.u32 12, %s19
          %s216 = ssub.s32 21, %s215
          %p217 = scmp.lt.s32.totalorder %s216, 12
          %s218 = scalar_select %p217, %s216, 12
          %s219 = smul.u32 64, %s218
          %p220 = scmp.lt.s32.totalorder %s215, 20
          %s221 = scalar_select %p220, %s215, 20
          %s222 = smul.addr %s221, 4
          %s223 = scalar_lea.vmem %s0, %s222
          %s224 = smul.u32 12, %s19
          %s225 = ssub.s32 21, %s224
          %p226 = scmp.lt.s32.totalorder %s225, 12
          %s227 = scalar_select %p226, %s225, 12
          %s228 = smul.u32 64, %s227
        $region36: #{tpu_custom_call.1} parent=31 // pred_fallthru
          _
      $region32: #{tpu_custom_call.1} parent=5 // pred_fallthru
        _
      %p229 = scmp.le.s32.totalorder 1, %s19
      %p230 = scmp.lt.s32.totalorder %s19, 3
      %p231 = pnand %p229, %p230
      %p232 = pneg %p231
      // Predicated region
      $region37: #{tpu_custom_call.1} parent=5 // pred_check
        _
      $region38: #{tpu_custom_call.1} parent=5 // pred_check_branch
        %234 = sbr.rel (%p231) target = $region40
      $region39: #{tpu_custom_call.1} parent=5 // pred_region
        %s235 = ssub.s32 %s19, 1
        %s236 = smul.u32 12, %s24
        %s237 = ssub.s32 21, %s236
        %p238 = scmp.lt.s32.totalorder %s237, 12
        %s239 = scalar_select %p238, %s237, 12
        %s240 = smul.u32 64, %s239
        %p241 = scmp.lt.s32.totalorder %s236, 20
        %s242 = scalar_select %p241, %s236, 20
        %s243 = smul.addr %s242, 4
        %s244 = scalar_lea.vmem %s0, %s243
        %p245 = pneg %p45
        %p246 = pneg %p42
        %p247 = pneg %p66
        %p248 = pneg %p63
        %p249 = pneg %p87
        %p250 = pneg %p84
        %p251 = pneg %p108
        %p252 = pneg %p105
        %p253 = pneg %p129
        %p254 = pneg %p126
        %p255 = pneg %p155
        %p256 = pneg %p152
        %s257 = sand.u32 %s142, 1
        %s258 = scalar_lea.sflag [#allocation3], %s257
        %s259 = sand.u32 %s142, 1
        %s260 = smul.addr %s259, 96
        %s261 = scalar_lea.vmem [#allocation2], %s260
        %p262 = pneg %p181
        %p263 = pneg %p178
        %s264 = sand.u32 %s168, 1
        %s265 = scalar_lea.sflag [#allocation5], %s264
        %s266 = sand.u32 %s168, 1
        %s267 = smul.addr %s266, 96
        %s268 = scalar_lea.vmem [#allocation4], %s267
        %s269 = smul.u32 12, %s24
        %s270 = ssub.s32 21, %s269
        %p271 = scmp.lt.s32.totalorder %s270, 12
        %s272 = scalar_select %p271, %s270, 12
        %s273 = smul.u32 64, %s272
        %p274 = scmp.lt.s32.totalorder %s269, 20
        %s275 = scalar_select %p274, %s269, 20
        %s276 = smul.addr %s275, 4
        %s277 = scalar_lea.vmem %s0, %s276
        %s278 = smul.u32 12, %s24
        %s279 = ssub.s32 21, %s278
        %p280 = scmp.lt.s32.totalorder %s279, 12
        %s281 = scalar_select %p280, %s279, 12
        %s282 = smul.u32 64, %s281
        %s283 = smul.u32 12, %s24
        %s284 = ssub.s32 21, %s283
        %p285 = scmp.lt.s32.totalorder %s284, 12
        %s286 = scalar_select %p285, %s284, 12
        %s287 = smul.u32 64, %s286
        %s288 = smul.u32 %s287, 2
        %s289 = smul.u32 12, %s24
        %s290 = ssub.s32 21, %s289
        %p291 = scmp.lt.s32.totalorder %s290, 12
        %s292 = scalar_select %p291, %s290, 12
        %s293 = smul.u32 64, %s292
        %s294 = smul.u32 %s293, 2
        %v296 = vld [vmem:[%s277] sm:$0xf]
        %v297 = vld [vmem:[%s277 + $0x4] sm:$0xf]
        %v298 = vld [vmem:[%s277 + $0x8] sm:$0xf]
        %v299 = vld [vmem:[%s277 + $0xc] sm:$0xf]
        %v300 = vld [vmem:[%s277 + $0x10] sm:$0xf]
        %v301 = vld [vmem:[%s277 + $0x14] sm:$0xf]
        %v302 = vld [vmem:[%s277 + $0x18] sm:$0xf]
        %v303 = vld [vmem:[%s277 + $0x1c] sm:$0xf]
        %v304 = vld [vmem:[%s277 + $0x20] sm:$0xf]
        %v305 = vld [vmem:[%s277 + $0x24] sm:$0xf]
        %v306 = vld [vmem:[%s277 + $0x28] sm:$0xf]
        %v307 = vld [vmem:[%s277 + $0x2c] sm:$0xf]
        %v308 = vld [vmem:[%s1] sm:$0xff]
        %v309 = vld [vmem:[%s1 + $0x8] sm:$0xff]
        %v310 = vld [vmem:[%s1 + $0x10] sm:$0xff]
        %v311 = vld [vmem:[%s1 + $0x18] sm:$0xff]
        %v312 = vld [vmem:[%s2] sm:$0xff]
        %v313 = vld [vmem:[%s2 + $0x8] sm:$0xff]
        %v314 = vld [vmem:[%s2 + $0x10] sm:$0xff]
        %v315 = vld [vmem:[%s2 + $0x18] sm:$0xff]
        %v316 = vld [vmem:[%s3] sm:$0x3]
        %v318 = vlaneseq
        %v319 = vshrl.u32 %v318, 7
        %v320 = vsub.s32 0, %v319
        %v321 = vrot.slane %v316, %v320
        %v322 = vlaneseq
        %v323 = vshrl.u32 %v322, 7
        %v324 = vsub.s32 1, %v323
        %v325 = vrot.slane %v316, %v324
        %v340 = vunpack.c.l.b16 %v296
        %v341 = vunpack.c.l.b16 %v297
        %v342 = vunpack.c.l.b16 %v298
        %v343 = vunpack.c.l.b16 %v299
        %v344 = vunpack.c.l.b16 %v300
        %v345 = vunpack.c.l.b16 %v301
        %v346 = vunpack.c.l.b16 %v302
        %v347 = vunpack.c.l.b16 %v303
        %v348 = vunpack.c.l.b16 %v304
        %v349 = vunpack.c.l.b16 %v305
        %v350 = vunpack.c.l.b16 %v306
        %v351 = vunpack.c.l.b16 %v307
        %v352 = vpack.c.b16 %v341, %v340
        %v353 = vpack.c.b16 %v343, %v342
        %v354 = vpack.c.b16 %v345, %v344
        %v355 = vpack.c.b16 %v347, %v346
        %v356 = vpack.c.b16 %v349, %v348
        %v357 = vpack.c.b16 %v351, %v350
        %v362 = vunpack.c.l.b16 %v308
        %v363 = vunpack.c.h.b16 %v308
        %v364 = vunpack.c.l.b16 %v309
        %v365 = vunpack.c.h.b16 %v309
        %v366 = vunpack.c.l.b16 %v310
        %v367 = vunpack.c.h.b16 %v310
        %v368 = vunpack.c.l.b16 %v311
        %v369 = vunpack.c.h.b16 %v311
        %v370 = vpack.c.b16 %v364, %v362
        %v371 = vpack.c.b16 %v365, %v363
        %v372 = vpack.c.b16 %v368, %v366
        %v373 = vpack.c.b16 %v369, %v367
        %vm378 = vcmask 261120
        %v380 = vsel %vm378, %v352, 0
        %v383 = vsel %vm378, %v353, 0
        %v386 = vsel %vm378, %v354, 0
        %v389 = vsel %vm378, %v355, 0
        %v392 = vsel %vm378, %v356, 0
        %v395 = vsel %vm378, %v357, 0
        %397 = vmatprep.subr.bf16.mxu0 %v371
        %398 = vmatpush1.bf16.msra.mxu0 %v370
        %399 = vmatprep.subr.bf16.mxu0 %v373
        %400 = vmatpush1.bf16.msra.mxu0 %v372
        %401 = vmatprep.subr.bf16.mxu0 0
        %402 = vmatpush1.bf16.msra.mxu0 0
        %403 = vmatprep.subr.bf16.mxu0 0
        %404 = vmatpush1.bf16.msra.mxu0 0
        %405 = vmatprep.subr.bf16.mxu0 0
        %406 = vmatpush1.bf16.msra.mxu0 0
        %407 = vmatprep.subr.bf16.mxu0 0
        %408 = vmatpush1.bf16.msra.mxu0 0
        %409 = vmatprep.subr.bf16.mxu0 0
        %410 = vmatpush1.bf16.msra.mxu0 0
        %411 = vmatprep.subr.bf16.mxu0 0
        %412 = vmatpush1.bf16.msra.mxu0 0
        %413 = vmatprep.subr.bf16.mxu0 0
        %414 = vmatpush1.bf16.msra.mxu0 0
        %415 = vmatprep.subr.bf16.mxu0 0
        %416 = vmatpush1.bf16.msra.mxu0 0
        %417 = vmatprep.subr.bf16.mxu0 0
        %418 = vmatpush1.bf16.msra.mxu0 0
        %419 = vmatprep.subr.bf16.mxu0 0
        %420 = vmatpush1.bf16.msra.mxu0 0
        %421 = vmatprep.subr.bf16.mxu0 0
        %422 = vmatpush1.bf16.msra.mxu0 0
        %423 = vmatprep.subr.bf16.mxu0 0
        %424 = vmatpush1.bf16.msra.mxu0 0
        %425 = vmatprep.subr.bf16.mxu0 0
        %426 = vmatpush1.bf16.msra.mxu0 0
        %427 = vmatprep.subr.bf16.mxu0 0
        %428 = vmatpush1.bf16.msra.mxu0 0
        %429 = vmatprep.mubr.bf16.mxu0 0
        %430 = vmatmul.mubr.bf16.gmra.mrb[0].mxu0 %v380
        %v431 = vpop.f32.mrb[0].mxu0
        %v432 = vadd.f32 %v321, %v431
        %v433 = vpop.f32.mrb[0].mxu0
        %v434 = vadd.f32 %v325, %v433
        %v435 = vpop.f32.mrb[0].mxu0
        %v436 = vadd.f32 %v321, %v435
        %v437 = vpop.f32.mrb[0].mxu0
        %v438 = vadd.f32 %v325, %v437
        %439 = vmatprep.mubr.bf16.mxu0 0
        %440 = vmatmul.mubr.bf16.gmra.mrb[0].mxu0 %v383
        %v441 = vpop.f32.mrb[0].mxu0
        %v442 = vadd.f32 %v321, %v441
        %v443 = vpop.f32.mrb[0].mxu0
        %v444 = vadd.f32 %v325, %v443
        %v445 = vpop.f32.mrb[0].mxu0
        %v446 = vadd.f32 %v321, %v445
        %v447 = vpop.f32.mrb[0].mxu0
        %v448 = vadd.f32 %v325, %v447
        %449 = vmatprep.mubr.bf16.mxu0 0
        %450 = vmatmul.mubr.bf16.gmra.mrb[0].mxu0 %v386
        %v451 = vpop.f32.mrb[0].mxu0
        %v452 = vadd.f32 %v321, %v451
        %v453 = vpop.f32.mrb[0].mxu0
        %v454 = vadd.f32 %v325, %v453
        %v455 = vpop.f32.mrb[0].mxu0
        %v456 = vadd.f32 %v321, %v455
        %v457 = vpop.f32.mrb[0].mxu0
        %v458 = vadd.f32 %v325, %v457
        %459 = vmatprep.mubr.bf16.mxu0 0
        %460 = vmatmul.mubr.bf16.gmra.mrb[0].mxu0 %v389
        %v461 = vpop.f32.mrb[0].mxu0
        %v462 = vadd.f32 %v321, %v461
        %v463 = vpop.f32.mrb[0].mxu0
        %v464 = vadd.f32 %v325, %v463
        %v465 = vpop.f32.mrb[0].mxu0
        %v466 = vadd.f32 %v321, %v465
        %v467 = vpop.f32.mrb[0].mxu0
        %v468 = vadd.f32 %v325, %v467
        %469 = vmatprep.mubr.bf16.mxu0 0
        %470 = vmatmul.mubr.bf16.gmra.mrb[0].mxu0 %v392
        %v471 = vpop.f32.mrb[0].mxu0
        %v472 = vadd.f32 %v321, %v471
        %v473 = vpop.f32.mrb[0].mxu0
        %v474 = vadd.f32 %v325, %v473
        %v475 = vpop.f32.mrb[0].mxu0
        %v476 = vadd.f32 %v321, %v475
        %v477 = vpop.f32.mrb[0].mxu0
        %v478 = vadd.f32 %v325, %v477
        %479 = vmatprep.mubr.bf16.mxu0 0
        %480 = vmatmul.mubr.bf16.gmra.mrb[0].mxu0 %v395
        %v481 = vpop.f32.mrb[0].mxu0
        %v482 = vadd.f32 %v321, %v481
        %v483 = vpop.f32.mrb[0].mxu0
        %v484 = vadd.f32 %v325, %v483
        %v485 = vpop.f32.mrb[0].mxu0
        %v486 = vadd.f32 %v321, %v485
        %v487 = vpop.f32.mrb[0].mxu0
        %v488 = vadd.f32 %v325, %v487
        %489 = vdwg.mxu0
        %v490 = vmax.f32 %v432, 0.0
        %v491 = vmax.f32 %v434, 0.0
        %v492 = vmax.f32 %v436, 0.0
        %v493 = vmax.f32 %v438, 0.0
        %v494 = vmax.f32 %v442, 0.0
        %v495 = vmax.f32 %v444, 0.0
        %v496 = vmax.f32 %v446, 0.0
        %v497 = vmax.f32 %v448, 0.0
        %v498 = vmax.f32 %v452, 0.0
        %v499 = vmax.f32 %v454, 0.0
        %v500 = vmax.f32 %v456, 0.0
        %v501 = vmax.f32 %v458, 0.0
        %v502 = vmax.f32 %v462, 0.0
        %v503 = vmax.f32 %v464, 0.0
        %v504 = vmax.f32 %v466, 0.0
        %v505 = vmax.f32 %v468, 0.0
        %v506 = vmax.f32 %v472, 0.0
        %v507 = vmax.f32 %v474, 0.0
        %v508 = vmax.f32 %v476, 0.0
        %v509 = vmax.f32 %v478, 0.0
        %v510 = vmax.f32 %v482, 0.0
        %v511 = vmax.f32 %v484, 0.0
        %v512 = vmax.f32 %v486, 0.0
        %v513 = vmax.f32 %v488, 0.0
        %v514 = vpack.c.bf16 %v492, %v490
        %v515 = vpack.c.bf16 %v493, %v491
        %v516 = vpack.c.bf16 %v496, %v494
        %v517 = vpack.c.bf16 %v497, %v495
        %v518 = vpack.c.bf16 %v500, %v498
        %v519 = vpack.c.bf16 %v501, %v499
        %v520 = vpack.c.bf16 %v504, %v502
        %v521 = vpack.c.bf16 %v505, %v503
        %v522 = vpack.c.bf16 %v508, %v506
        %v523 = vpack.c.bf16 %v509, %v507
        %v524 = vpack.c.bf16 %v512, %v510
        %v525 = vpack.c.bf16 %v513, %v511
        %v538 = vunpack.c.l.b16 %v514
        %v539 = vunpack.c.l.b16 %v515
        %v540 = vunpack.c.h.b16 %v514
        %v541 = vunpack.c.h.b16 %v515
        %v542 = vunpack.c.l.b16 %v516
        %v543 = vunpack.c.l.b16 %v517
        %v544 = vunpack.c.h.b16 %v516
        %v545 = vunpack.c.h.b16 %v517
        %v546 = vunpack.c.l.b16 %v518
        %v547 = vunpack.c.l.b16 %v519
        %v548 = vunpack.c.h.b16 %v518
        %v549 = vunpack.c.h.b16 %v519
        %v550 = vunpack.c.l.b16 %v520
        %v551 = vunpack.c.l.b16 %v521
        %v552 = vunpack.c.h.b16 %v520
        %v553 = vunpack.c.h.b16 %v521
        %v554 = vunpack.c.l.b16 %v522
        %v555 = vunpack.c.l.b16 %v523
        %v556 = vunpack.c.h.b16 %v522
        %v557 = vunpack.c.h.b16 %v523
        %v558 = vunpack.c.l.b16 %v524
        %v559 = vunpack.c.l.b16 %v525
        %v560 = vunpack.c.h.b16 %v524
        %v561 = vunpack.c.h.b16 %v525
        %v562 = vpack.c.b16 %v539, %v538
        %v563 = vpack.c.b16 %v541, %v540
        %v564 = vpack.c.b16 %v543, %v542
        %v565 = vpack.c.b16 %v545, %v544
        %v566 = vpack.c.b16 %v547, %v546
        %v567 = vpack.c.b16 %v549, %v548
        %v568 = vpack.c.b16 %v551, %v550
        %v569 = vpack.c.b16 %v553, %v552
        %v570 = vpack.c.b16 %v555, %v554
        %v571 = vpack.c.b16 %v557, %v556
        %v572 = vpack.c.b16 %v559, %v558
        %v573 = vpack.c.b16 %v561, %v560
        %vm586 = vcmask 1043456
        %vm587 = vcmask 523268
        %vm588 = vmor %vm587, %vm586
        %589 = vst.msk [vmem:[%s261] sm:$0xff] %vm588, %v562
        %590 = vst.msk [vmem:[%s261 + $0x8] sm:$0xff] %vm588, %v563
        %591 = vst.msk [vmem:[%s261 + $0x10] sm:$0xff] %vm588, %v564
        %592 = vst.msk [vmem:[%s261 + $0x18] sm:$0xff] %vm588, %v565
        %593 = vst.msk [vmem:[%s261 + $0x20] sm:$0xff] %vm588, %v566
        %594 = vst.msk [vmem:[%s261 + $0x28] sm:$0xff] %vm588, %v567
        %595 = vst.msk [vmem:[%s261 + $0x30] sm:$0xff] %vm588, %v568
        %596 = vst.msk [vmem:[%s261 + $0x38] sm:$0xff] %vm588, %v569
        %597 = vst.msk [vmem:[%s261 + $0x40] sm:$0xff] %vm588, %v570
        %598 = vst.msk [vmem:[%s261 + $0x48] sm:$0xff] %vm588, %v571
        %599 = vst.msk [vmem:[%s261 + $0x50] sm:$0xff] %vm588, %v572
        %600 = vst.msk [vmem:[%s261 + $0x58] sm:$0xff] %vm588, %v573
        %v601 = vld [vmem:[%s4] sm:$0x3]
        %v603 = vlaneseq
        %v604 = vshrl.u32 %v603, 7
        %v605 = vsub.s32 0, %v604
        %v606 = vrot.slane %v601, %v605
        %v607 = vlaneseq
        %v608 = vshrl.u32 %v607, 7
        %v609 = vsub.s32 1, %v608
        %v610 = vrot.slane %v601, %v609
        %v617 = vunpack.c.l.b16 %v312
        %v618 = vunpack.c.h.b16 %v312
        %v619 = vunpack.c.l.b16 %v313
        %v620 = vunpack.c.h.b16 %v313
        %v621 = vunpack.c.l.b16 %v314
        %v622 = vunpack.c.h.b16 %v314
        %v623 = vunpack.c.l.b16 %v315
        %v624 = vunpack.c.h.b16 %v315
        %v625 = vpack.c.b16 %v619, %v617
        %v626 = vpack.c.b16 %v620, %v618
        %v627 = vpack.c.b16 %v623, %v621
        %v628 = vpack.c.b16 %v624, %v622
        %633 = vmatprep.subr.bf16.mxu0 %v626
        %634 = vmatpush1.bf16.msra.mxu0 %v625
        %635 = vmatprep.subr.bf16.mxu0 %v628
        %636 = vmatpush1.bf16.msra.mxu0 %v627
        %637 = vmatprep.subr.bf16.mxu0 0
        %638 = vmatpush1.bf16.msra.mxu0 0
        %639 = vmatprep.subr.bf16.mxu0 0
        %640 = vmatpush1.bf16.msra.mxu0 0
        %641 = vmatprep.subr.bf16.mxu0 0
        %642 = vmatpush1.bf16.msra.mxu0 0
        %643 = vmatprep.subr.bf16.mxu0 0
        %644 = vmatpush1.bf16.msra.mxu0 0
        %645 = vmatprep.subr.bf16.mxu0 0
        %646 = vmatpush1.bf16.msra.mxu0 0
        %647 = vmatprep.subr.bf16.mxu0 0
        %648 = vmatpush1.bf16.msra.mxu0 0
        %649 = vmatprep.subr.bf16.mxu0 0
        %650 = vmatpush1.bf16.msra.mxu0 0
        %651 = vmatprep.subr.bf16.mxu0 0
        %652 = vmatpush1.bf16.msra.mxu0 0
        %653 = vmatprep.subr.bf16.mxu0 0
        %654 = vmatpush1.bf16.msra.mxu0 0
        %655 = vmatprep.subr.bf16.mxu0 0
        %656 = vmatpush1.bf16.msra.mxu0 0
        %657 = vmatprep.subr.bf16.mxu0 0
        %658 = vmatpush1.bf16.msra.mxu0 0
        %659 = vmatprep.subr.bf16.mxu0 0
        %660 = vmatpush1.bf16.msra.mxu0 0
        %661 = vmatprep.subr.bf16.mxu0 0
        %662 = vmatpush1.bf16.msra.mxu0 0
        %663 = vmatprep.subr.bf16.mxu0 0
        %664 = vmatpush1.bf16.msra.mxu0 0
        %665 = vmatprep.mubr.bf16.mxu0 0
        %666 = vmatmul.mubr.bf16.gmra.mrb[0].mxu0 %v380
        %v667 = vpop.f32.mrb[0].mxu0
        %v668 = vadd.f32 %v606, %v667
        %v669 = vpop.f32.mrb[0].mxu0
        %v670 = vadd.f32 %v610, %v669
        %v671 = vpop.f32.mrb[0].mxu0
        %v672 = vadd.f32 %v606, %v671
        %v673 = vpop.f32.mrb[0].mxu0
        %v674 = vadd.f32 %v610, %v673
        %675 = vmatprep.mubr.bf16.mxu0 0
        %676 = vmatmul.mubr.bf16.gmra.mrb[0].mxu0 %v383
        %v677 = vpop.f32.mrb[0].mxu0
        %v678 = vadd.f32 %v606, %v677
        %v679 = vpop.f32.mrb[0].mxu0
        %v680 = vadd.f32 %v610, %v679
        %v681 = vpop.f32.mrb[0].mxu0
        %v682 = vadd.f32 %v606, %v681
        %v683 = vpop.f32.mrb[0].mxu0
        %v684 = vadd.f32 %v610, %v683
        %685 = vmatprep.mubr.bf16.mxu0 0
        %686 = vmatmul.mubr.bf16.gmra.mrb[0].mxu0 %v386
        %v687 = vpop.f32.mrb[0].mxu0
        %v688 = vadd.f32 %v606, %v687
        %v689 = vpop.f32.mrb[0].mxu0
        %v690 = vadd.f32 %v610, %v689
        %v691 = vpop.f32.mrb[0].mxu0
        %v692 = vadd.f32 %v606, %v691
        %v693 = vpop.f32.mrb[0].mxu0
        %v694 = vadd.f32 %v610, %v693
        %695 = vmatprep.mubr.bf16.mxu0 0
        %696 = vmatmul.mubr.bf16.gmra.mrb[0].mxu0 %v389
        %v697 = vpop.f32.mrb[0].mxu0
        %v698 = vadd.f32 %v606, %v697
        %v699 = vpop.f32.mrb[0].mxu0
        %v700 = vadd.f32 %v610, %v699
        %v701 = vpop.f32.mrb[0].mxu0
        %v702 = vadd.f32 %v606, %v701
        %v703 = vpop.f32.mrb[0].mxu0
        %v704 = vadd.f32 %v610, %v703
        %705 = vmatprep.mubr.bf16.mxu0 0
        %706 = vmatmul.mubr.bf16.gmra.mrb[0].mxu0 %v392
        %v707 = vpop.f32.mrb[0].mxu0
        %v708 = vadd.f32 %v606, %v707
        %v709 = vpop.f32.mrb[0].mxu0
        %v710 = vadd.f32 %v610, %v709
        %v711 = vpop.f32.mrb[0].mxu0
        %v712 = vadd.f32 %v606, %v711
        %v713 = vpop.f32.mrb[0].mxu0
        %v714 = vadd.f32 %v610, %v713
        %715 = vmatprep.mubr.bf16.mxu0 0
        %716 = vmatmul.mubr.bf16.gmra.mrb[0].mxu0 %v395
        %v717 = vpop.f32.mrb[0].mxu0
        %v718 = vadd.f32 %v606, %v717
        %v719 = vpop.f32.mrb[0].mxu0
        %v720 = vadd.f32 %v610, %v719
        %v721 = vpop.f32.mrb[0].mxu0
        %v722 = vadd.f32 %v606, %v721
        %v723 = vpop.f32.mrb[0].mxu0
        %v724 = vadd.f32 %v610, %v723
        %725 = vdwg.mxu0
        %v726 = vmax.f32 %v668, 0.0
        %v727 = vmax.f32 %v670, 0.0
        %v728 = vmax.f32 %v672, 0.0
        %v729 = vmax.f32 %v674, 0.0
        %v730 = vmax.f32 %v678, 0.0
        %v731 = vmax.f32 %v680, 0.0
        %v732 = vmax.f32 %v682, 0.0
        %v733 = vmax.f32 %v684, 0.0
        %v734 = vmax.f32 %v688, 0.0
        %v735 = vmax.f32 %v690, 0.0
        %v736 = vmax.f32 %v692, 0.0
        %v737 = vmax.f32 %v694, 0.0
        %v738 = vmax.f32 %v698, 0.0
        %v739 = vmax.f32 %v700, 0.0
        %v740 = vmax.f32 %v702, 0.0
        %v741 = vmax.f32 %v704, 0.0
        %v742 = vmax.f32 %v708, 0.0
        %v743 = vmax.f32 %v710, 0.0
        %v744 = vmax.f32 %v712, 0.0
        %v745 = vmax.f32 %v714, 0.0
        %v746 = vmax.f32 %v718, 0.0
        %v747 = vmax.f32 %v720, 0.0
        %v748 = vmax.f32 %v722, 0.0
        %v749 = vmax.f32 %v724, 0.0
        %v750 = vpack.c.bf16 %v728, %v726
        %v751 = vpack.c.bf16 %v729, %v727
        %v752 = vpack.c.bf16 %v732, %v730
        %v753 = vpack.c.bf16 %v733, %v731
        %v754 = vpack.c.bf16 %v736, %v734
        %v755 = vpack.c.bf16 %v737, %v735
        %v756 = vpack.c.bf16 %v740, %v738
        %v757 = vpack.c.bf16 %v741, %v739
        %v758 = vpack.c.bf16 %v744, %v742
        %v759 = vpack.c.bf16 %v745, %v743
        %v760 = vpack.c.bf16 %v748, %v746
        %v761 = vpack.c.bf16 %v749, %v747
        %v774 = vunpack.c.l.b16 %v750
        %v775 = vunpack.c.l.b16 %v751
        %v776 = vunpack.c.h.b16 %v750
        %v777 = vunpack.c.h.b16 %v751
        %v778 = vunpack.c.l.b16 %v752
        %v779 = vunpack.c.l.b16 %v753
        %v780 = vunpack.c.h.b16 %v752
        %v781 = vunpack.c.h.b16 %v753
        %v782 = vunpack.c.l.b16 %v754
        %v783 = vunpack.c.l.b16 %v755
        %v784 = vunpack.c.h.b16 %v754
        %v785 = vunpack.c.h.b16 %v755
        %v786 = vunpack.c.l.b16 %v756
        %v787 = vunpack.c.l.b16 %v757
        %v788 = vunpack.c.h.b16 %v756
        %v789 = vunpack.c.h.b16 %v757
        %v790 = vunpack.c.l.b16 %v758
        %v791 = vunpack.c.l.b16 %v759
        %v792 = vunpack.c.h.b16 %v758
        %v793 = vunpack.c.h.b16 %v759
        %v794 = vunpack.c.l.b16 %v760
        %v795 = vunpack.c.l.b16 %v761
        %v796 = vunpack.c.h.b16 %v760
        %v797 = vunpack.c.h.b16 %v761
        %v798 = vpack.c.b16 %v775, %v774
        %v799 = vpack.c.b16 %v777, %v776
        %v800 = vpack.c.b16 %v779, %v778
        %v801 = vpack.c.b16 %v781, %v780
        %v802 = vpack.c.b16 %v783, %v782
        %v803 = vpack.c.b16 %v785, %v784
        %v804 = vpack.c.b16 %v787, %v786
        %v805 = vpack.c.b16 %v789, %v788
        %v806 = vpack.c.b16 %v791, %v790
        %v807 = vpack.c.b16 %v793, %v792
        %v808 = vpack.c.b16 %v795, %v794
        %v809 = vpack.c.b16 %v797, %v796
        %822 = vst.msk [vmem:[%s268] sm:$0xff] %vm588, %v798
        %823 = vst.msk [vmem:[%s268 + $0x8] sm:$0xff] %vm588, %v799
        %824 = vst.msk [vmem:[%s268 + $0x10] sm:$0xff] %vm588, %v800
        %825 = vst.msk [vmem:[%s268 + $0x18] sm:$0xff] %vm588, %v801
        %826 = vst.msk [vmem:[%s268 + $0x20] sm:$0xff] %vm588, %v802
        %827 = vst.msk [vmem:[%s268 + $0x28] sm:$0xff] %vm588, %v803
        %828 = vst.msk [vmem:[%s268 + $0x30] sm:$0xff] %vm588, %v804
        %829 = vst.msk [vmem:[%s268 + $0x38] sm:$0xff] %vm588, %v805
        %830 = vst.msk [vmem:[%s268 + $0x40] sm:$0xff] %vm588, %v806
        %831 = vst.msk [vmem:[%s268 + $0x48] sm:$0xff] %vm588, %v807
        %832 = vst.msk [vmem:[%s268 + $0x50] sm:$0xff] %vm588, %v808
        %833 = vst.msk [vmem:[%s268 + $0x58] sm:$0xff] %vm588, %v809
        %s834 = sand.u32 %s142, 1
        %s835 = scalar_lea.sflag [#allocation3], %s834
        %s836 = sand.u32 %s142, 1
        %s837 = smul.addr %s836, 96
        %s838 = scalar_lea.vmem [#allocation2], %s837
        %s839 = sand.u32 %s168, 1
        %s840 = scalar_lea.sflag [#allocation5], %s839
        %s841 = sand.u32 %s168, 1
        %s842 = smul.addr %s841, 96
        %s843 = scalar_lea.vmem [#allocation4], %s842
        // Predicated region
        $region41: #{tpu_custom_call.1} parent=39 // pred_check
          %p844 = pneg %p152
        $region42: #{tpu_custom_call.1} parent=39 // pred_check_branch
          %846 = sbr.rel (%p844) target = $region44
        $region43: #{tpu_custom_call.1} parent=39 // pred_region
          %s847 = smul.u32 12, %s24
          %s848 = ssub.s32 21, %s847
          %p849 = scmp.lt.s32.totalorder %s848, 12
          %s850 = scalar_select %p849, %s848, 12
          %s851 = smul.u32 64, %s850
          %s852 = smul.u32 %s851, 2
          %s854 = ssub.s32 1536, %s852
          %855 = vsyncadd %s835, %s854
          %p856 = scmp.ne.s32.totalorder 0, %s852
          %s857 = smul.addr %s847, 2
          %s858 = smul.addr %s857, 64
          %s859 = scalar_lea.hbm %s5, %s858
          %s860 = smul.u32 8, %s850
          %s861 = sshll.u32 %s838, 4
          %s862 = int_to_ptr.vmem [resolvable:$true] %s861
          %s863 = sshll.u32 %s860, 4
          %867 = dma.vmem_to_hbm [thread:$0]  (%p856), %s862, %s863, %s859, %s835, 128, 128, 8
        $region44: #{tpu_custom_call.1} parent=39 // pred_fallthru
          _
        // Predicated region
        $region45: #{tpu_custom_call.1} parent=39 // pred_check
          %p868 = pneg %p178
        $region46: #{tpu_custom_call.1} parent=39 // pred_check_branch
          %870 = sbr.rel (%p868) target = $region48
        $region47: #{tpu_custom_call.1} parent=39 // pred_region
          %s871 = smul.u32 12, %s24
          %s872 = ssub.s32 21, %s871
          %p873 = scmp.lt.s32.totalorder %s872, 12
          %s874 = scalar_select %p873, %s872, 12
          %s875 = smul.u32 64, %s874
          %s876 = smul.u32 %s875, 2
          %s878 = ssub.s32 1536, %s876
          %879 = vsyncadd %s840, %s878
          %p880 = scmp.ne.s32.totalorder 0, %s876
          %s881 = smul.addr %s871, 2
          %s882 = smul.addr %s881, 64
          %s883 = scalar_lea.hbm %s6, %s882
          %s884 = smul.u32 8, %s874
          %s885 = sshll.u32 %s843, 4
          %s886 = int_to_ptr.vmem [resolvable:$true] %s885
          %s887 = sshll.u32 %s884, 4
          %891 = dma.vmem_to_hbm [thread:$0]  (%p880), %s886, %s887, %s883, %s840, 128, 128, 8
        $region48: #{tpu_custom_call.1} parent=39 // pred_fallthru
          _
      $region40: #{tpu_custom_call.1} parent=5 // pred_fallthru
        _
      %p892 = scmp.le.s32.totalorder 2, %s19
      // Predicated region
      $region49: #{tpu_custom_call.1} parent=5 // pred_check
        %p893 = pneg %p892
      $region50: #{tpu_custom_call.1} parent=5 // pred_check_branch
        %895 = sbr.rel (%p893) target = $region52
      $region51: #{tpu_custom_call.1} parent=5 // pred_region
        %s896 = ssub.s32 %s19, 2
        // Predicated region
        $region53: #{tpu_custom_call.1} parent=51 // pred_check
          %p897 = pneg %p158
        $region54: #{tpu_custom_call.1} parent=51 // pred_check_branch
          %899 = sbr.rel (%p897) target = $region56
        $region55: #{tpu_custom_call.1} parent=51 // pred_region
          %s900 = sand.u32 %s143, 1
          %s901 = scalar_lea.sflag [#allocation3], %s900
          %s902 = sand.u32 %s143, 1
          %s903 = smul.addr %s902, 96
          %s904 = scalar_lea.vmem [#allocation2], %s903
          %905 = dma.done %s901, 1536
        $region56: #{tpu_custom_call.1} parent=51 // pred_fallthru
          _
        // Predicated region
        $region57: #{tpu_custom_call.1} parent=51 // pred_check
          %p906 = pneg %p184
        $region58: #{tpu_custom_call.1} parent=51 // pred_check_branch
          %908 = sbr.rel (%p906) target = $region60
        $region59: #{tpu_custom_call.1} parent=51 // pred_region
          %s909 = sand.u32 %s169, 1
          %s910 = scalar_lea.sflag [#allocation5], %s909
          %s911 = sand.u32 %s169, 1
          %s912 = smul.addr %s911, 96
          %s913 = scalar_lea.vmem [#allocation4], %s912
          %914 = dma.done %s910, 1536
        $region60: #{tpu_custom_call.1} parent=51 // pred_fallthru
          _
      $region52: #{tpu_custom_call.1} parent=5 // pred_fallthru
        _
    $region6: #{tpu_custom_call.1} parent=1 // loop_footer
      %s23 = sadd.s32 1, %s19
    $region7: #{tpu_custom_call.1} parent=1 // loop_footer_branch
      %18 = sbr.rel target = $region3
    $region8: #{tpu_custom_call.1} parent=1 // loop_exit
      _
    %915 = vsyncpa [#allocation3], 1
    %s916 = scalar_lea.sflag [#allocation3], 1
    %917 = vsyncpa %s916, 1
    %918 = vsyncpa [#allocation5], 1
    %s919 = scalar_lea.sflag [#allocation5], 1
    %920 = vsyncpa %s919, 1

</llo_original>
